<compile_context>
chip_gen: v7x
topology: tpu7x:2x2x1
jax: 0.10.0
libtpu: 0.0.40
codegen_flags: <defaults>
</compile_context>

<pallas_src>
import functools

import jax
import jax.numpy as jnp
from jax.experimental import pallas as pl
from jax.experimental.pallas import tpu as pltpu

LANE = 128     # TPU lane width (last dim of a vreg)
SUBLANE = 8    # TPU sublane width


def _round_up(x, m):
    return ((x + m - 1) // m) * m


def _actor_kernel(s_ref, p_ref, out_ref, *, sp, lw):
    """One batch tile of the Actor MLP.

    s_ref  : [TB, sp]  zero-padded state tile
    p_ref  : [R,  lw]  packed parameter slab (constant index_map -> VMEM resident)
    out_ref: [TB, lw]  lane-dense output tile (true actions live in [:, :a_dim])
    """
    o_w2 = sp            # w1 rows: [0, sp)
    o_w3 = sp + lw       # w2 rows: [sp, sp+lw)
    o_b = sp + 2 * lw    # w3 rows: [sp+lw, sp+2*lw); biases after that

    s = s_ref[...]
    w1 = p_ref[0:o_w2, :]
    w2 = p_ref[o_w2:o_w3, :]
    w3 = p_ref[o_w3:o_b, :]
    b1 = p_ref[o_b + 0:o_b + 1, :]
    b2 = p_ref[o_b + 1:o_b + 2, :]
    b3 = p_ref[o_b + 2:o_b + 3, :]

    # Layer 1: Linear + ReLU   (zero-padded cols of s / rows of w1 contribute 0)
    h1 = jnp.maximum(jnp.dot(s, w1, preferred_element_type=jnp.float32) + b1, 0.0)
    # Layer 2: Linear + ReLU
    h2 = jnp.maximum(jnp.dot(h1, w2, preferred_element_type=jnp.float32) + b2, 0.0)
    # Layer 3: Linear + Tanh  (tanh runs on the EUP; padded lanes give tanh(0)=0)
    a = jnp.dot(h2, w3, preferred_element_type=jnp.float32) + b3
    out_ref[...] = jnp.tanh(a).astype(out_ref.dtype)


def pack_actor_params(params):
    """Pack w1,b1,w2,b2,w3,b3 into one lane-dense, sublane-aligned f32 slab.

    Returns (slab, sp, lw) where
      sp = sublane-padded s_dim, lw = lane-padded max(hidden, a_dim, 128).
    Slab row layout: [w1 | w2 | w3 | b1;b2;b3;pad] with zero padding everywhere,
    which keeps the padded math bit-exact w.r.t. the unpadded network.
    """
    w1, b1 = params["w1"], params["b1"]
    w2, b2 = params["w2"], params["b2"]
    w3, b3 = params["w3"], params["b3"]
    s_dim, hidden = w1.shape
    a_dim = w3.shape[1]

    sp = _round_up(max(s_dim, SUBLANE), SUBLANE)
    lw = _round_up(max(hidden, a_dim, LANE), LANE)
    rows = sp + 2 * lw + SUBLANE

    slab = jnp.zeros((rows, lw), jnp.float32)
    slab = slab.at[:s_dim, :hidden].set(w1.astype(jnp.float32))
    slab = slab.at[sp:sp + hidden, :hidden].set(w2.astype(jnp.float32))
    slab = slab.at[sp + lw:sp + lw + hidden, :a_dim].set(w3.astype(jnp.float32))
    o_b = sp + 2 * lw
    slab = slab.at[o_b + 0, :hidden].set(b1.reshape(-1).astype(jnp.float32))
    slab = slab.at[o_b + 1, :hidden].set(b2.reshape(-1).astype(jnp.float32))
    slab = slab.at[o_b + 2, :a_dim].set(b3.reshape(-1).astype(jnp.float32))
    return slab, sp, lw


def actor_forward(s, params, *, tb=256):
    """s: [B, s_dim] float32. params: dict of w1,b1,w2,b2,w3,b3 (w stored [in, out])."""
    s_dim, hidden = params["w1"].shape
    a_dim = params["w3"].shape[1]
    B = s.shape[0]

    slab, sp, lw = pack_actor_params(params)

    # Batch tile: multiple of 8 sublanes, capped by (padded) batch size.
    tb = _round_up(min(tb, _round_up(B, SUBLANE)), SUBLANE)
    b_pad = _round_up(B, tb)

    # Zero-pad state to [b_pad, sp]; padded rows/cols are sliced away afterwards.
    s_p = jnp.zeros((b_pad, sp), jnp.float32).at[:B, :s_dim].set(s.astype(jnp.float32))

    kernel = functools.partial(_actor_kernel, sp=sp, lw=lw)
    grid = (b_pad // tb,)

    flops = 2 * B * (s_dim * hidden + hidden * hidden + hidden * a_dim)
    bytes_accessed = (s_p.size + slab.size + b_pad * lw) * 4

    out_padded = pl.pallas_call(
        kernel,
        out_shape=jax.ShapeDtypeStruct((b_pad, lw), jnp.float32),
        grid_spec=pltpu.PrefetchScalarGridSpec(
            num_scalar_prefetch=0,
            grid=grid,
            in_specs=[
                # State tile marches along the batch grid axis (pipelined).
                pl.BlockSpec((tb, sp), lambda i: (i, 0)),
                # Parameter slab: constant block index -> fetched once, VMEM-resident.
                pl.BlockSpec(slab.shape, lambda i: (0, 0)),
            ],
            # Lane-dense output tile (lw is a multiple of 128 -> unmasked stores).
            out_specs=pl.BlockSpec((tb, lw), lambda i: (i, 0)),
        ),
        compiler_params=pltpu.CompilerParams(
            dimension_semantics=("parallel",),   # batch tiles split across TCs (v7x)
            vmem_limit_bytes=32 * 1024 * 1024,   # explicit; footprint here is < 1 MiB
        ),
        cost_estimate=pl.CostEstimate(
            flops=int(flops),
            transcendentals=int(B * a_dim),
            bytes_accessed=int(bytes_accessed),
        ),
    )(s_p, slab)

    return out_padded[:B, :a_dim]


def init_actor_params(key, s_dim, a_dim, hidden):
    """PyTorch nn.Linear default init (U(-1/sqrt(fan_in), 1/sqrt(fan_in))).
    Weights stored as [in, out] (pre-transposed for x @ W); biases 1-D [out]."""
    def linear(k, fan_in, fan_out):
        kw, kb = jax.random.split(k)
        bound = 1.0 / jnp.sqrt(fan_in)
        w = jax.random.uniform(kw, (fan_in, fan_out), jnp.float32, -bound, bound)
        b = jax.random.uniform(kb, (fan_out,), jnp.float32, -bound, bound)
        return w, b

    k1, k2, k3 = jax.random.split(key, 3)
    w1, b1 = linear(k1, s_dim, hidden)
    w2, b2 = linear(k2, hidden, hidden)
    w3, b3 = linear(k3, hidden, a_dim)
    return {"w1": w1, "b1": b1, "w2": w2, "b2": b2, "w3": w3, "b3": b3}


def actor_reference(s, p):
    h1 = jnp.maximum(s @ p["w1"] + p["b1"], 0.0)
    h2 = jnp.maximum(h1 @ p["w2"] + p["b2"], 0.0)
    return jnp.tanh(h2 @ p["w3"] + p["b3"])


if __name__ == "__main__":
    key = jax.random.PRNGKey(0)
    k_params, k_state1, k_state2 = jax.random.split(key, 3)

    # Small shapes matching the TD3 controller: state=12, action=4, hidden=32.
    batch, s_dim, a_dim, hidden = 8, 12, 4, 32
    params = init_actor_params(k_params, s_dim, a_dim, hidden)

    # Case 1: tiny batch (single grid step).
    s_small = jax.random.normal(k_state1, (batch, s_dim), jnp.float32)
    out_small = actor_forward(s_small, params)
    jax.block_until_ready(out_small)
    ref_small = actor_reference(s_small, params)
    assert out_small.shape == (batch, a_dim)
    assert jnp.allclose(out_small, ref_small, atol=1e-5, rtol=1e-5), "mismatch (small batch)"

    # Case 2: batch that exercises tiling + padding (300 -> tiles of 128, grid=(3,)).
    s_big = jax.random.normal(k_state2, (300, s_dim), jnp.float32)
    out_big = actor_forward(s_big, params, tb=128)
    jax.block_until_ready(out_big)
    ref_big = actor_reference(s_big, params)
    assert out_big.shape == (300, a_dim)
    assert jnp.allclose(out_big, ref_big, atol=1e-5, rtol=1e-5), "mismatch (tiled batch)"

    print("KERNEL_OK")
</pallas_src>

<mosaic_0001>
module attributes {stable_mosaic.version = 11 : i64} {
  func.func @_actor_kernel(%arg0: i32, %arg1: memref<8x16xf32, #tpu.memory_space<vmem>>, %arg2: memref<280x128xf32, #tpu.memory_space<vmem>>, %arg3: memref<8x128xf32, #tpu.memory_space<vmem>>) attributes {dimension_semantics = [#tpu.dimension_semantics<parallel>], iteration_bounds = array<i64: 1>, scalar_prefetch = 0 : i64, scratch_operands = 0 : i64, tpu.core_type = #tpu.core_type<tc>, window_params = [{transform_indices = @transform_0, window_bounds = array<i64: 8, 16>}, {pipeline_mode = #tpu.pipeline_mode<synchronous>, transform_indices = @transform_1, window_bounds = array<i64: 280, 128>}, {transform_indices = @transform_2, window_bounds = array<i64: 8, 128>}]} {
    %c0 = arith.constant 0 : index
    %c0_0 = arith.constant 0 : index
    %0 = vector.load %arg1[%c0, %c0_0] : memref<8x16xf32, #tpu.memory_space<vmem>>, vector<8x16xf32>
    %c0_1 = arith.constant 0 : index
    %c0_2 = arith.constant 0 : index
    %1 = vector.load %arg2[%c0_1, %c0_2] : memref<280x128xf32, #tpu.memory_space<vmem>>, vector<16x128xf32>
    %c16 = arith.constant 16 : index
    %c0_3 = arith.constant 0 : index
    %2 = vector.load %arg2[%c16, %c0_3] : memref<280x128xf32, #tpu.memory_space<vmem>>, vector<128x128xf32>
    %c144 = arith.constant 144 : index
    %c0_4 = arith.constant 0 : index
    %3 = vector.load %arg2[%c144, %c0_4] : memref<280x128xf32, #tpu.memory_space<vmem>>, vector<128x128xf32>
    %c272 = arith.constant 272 : index
    %c0_5 = arith.constant 0 : index
    %4 = vector.load %arg2[%c272, %c0_5] : memref<280x128xf32, #tpu.memory_space<vmem>>, vector<1x128xf32>
    %c273 = arith.constant 273 : index
    %c0_6 = arith.constant 0 : index
    %5 = vector.load %arg2[%c273, %c0_6] : memref<280x128xf32, #tpu.memory_space<vmem>>, vector<1x128xf32>
    %c274 = arith.constant 274 : index
    %c0_7 = arith.constant 0 : index
    %6 = vector.load %arg2[%c274, %c0_7] : memref<280x128xf32, #tpu.memory_space<vmem>>, vector<1x128xf32>
    %cst = arith.constant dense<0.000000e+00> : vector<8x128xf32>
    %7 = tpu.matmul %0, %1, %cst {dimension_numbers = #tpu.dot_dimension_numbers<[1], [0], [0], [1], [0, 0, 1, 1], [], []>} : vector<8x16xf32>, vector<16x128xf32>, vector<8x128xf32> -> vector<8x128xf32>
    %8 = vector.broadcast %4 : vector<1x128xf32> to vector<8x128xf32>
    %9 = arith.addf %7, %8 : vector<8x128xf32>
    %cst_8 = arith.constant 0.000000e+00 : f32
    %10 = vector.broadcast %cst_8 : f32 to vector<8x128xf32>
    %11 = arith.maximumf %9, %10 : vector<8x128xf32>
    %cst_9 = arith.constant dense<0.000000e+00> : vector<8x128xf32>
    %12 = tpu.matmul %11, %2, %cst_9 {dimension_numbers = #tpu.dot_dimension_numbers<[1], [0], [0], [1], [0, 0, 1, 1], [], []>} : vector<8x128xf32>, vector<128x128xf32>, vector<8x128xf32> -> vector<8x128xf32>
    %13 = vector.broadcast %5 : vector<1x128xf32> to vector<8x128xf32>
    %14 = arith.addf %12, %13 : vector<8x128xf32>
    %cst_10 = arith.constant 0.000000e+00 : f32
    %15 = vector.broadcast %cst_10 : f32 to vector<8x128xf32>
    %16 = arith.maximumf %14, %15 : vector<8x128xf32>
    %cst_11 = arith.constant dense<0.000000e+00> : vector<8x128xf32>
    %17 = tpu.matmul %16, %3, %cst_11 {dimension_numbers = #tpu.dot_dimension_numbers<[1], [0], [0], [1], [0, 0, 1, 1], [], []>} : vector<8x128xf32>, vector<128x128xf32>, vector<8x128xf32> -> vector<8x128xf32>
    %18 = vector.broadcast %6 : vector<1x128xf32> to vector<8x128xf32>
    %19 = arith.addf %17, %18 : vector<8x128xf32>
    %20 = math.tanh %19 : vector<8x128xf32>
    %c0_12 = arith.constant 0 : index
    %c0_13 = arith.constant 0 : index
    %21 = vector.load %arg3[%c0_12, %c0_13] : memref<8x128xf32, #tpu.memory_space<vmem>>, vector<8x128xf32>
    tpu.vector_store %arg3[%c0_12, %c0_13], %20 {strides = array<i32>} : memref<8x128xf32, #tpu.memory_space<vmem>>, vector<8x128xf32>,
    return
  }
  func.func @transform_0(%arg0: i32) -> (i32, i32) {
    %c0_i32 = arith.constant 0 : i32
    %c0_i32_0 = arith.constant 0 : i32
    return %arg0, %c0_i32 : i32, i32
  }
  func.func @transform_1(%arg0: i32) -> (i32, i32) {
    %c0_i32 = arith.constant 0 : i32
    %c0_i32_0 = arith.constant 0 : i32
    %c0_i32_1 = arith.constant 0 : i32
    return %c0_i32, %c0_i32_0 : i32, i32
  }
  func.func @transform_2(%arg0: i32) -> (i32, i32) {
    %c0_i32 = arith.constant 0 : i32
    %c0_i32_0 = arith.constant 0 : i32
    return %arg0, %c0_i32 : i32, i32
  }
}

</mosaic_0001>

<llo_original>
// kernel: tpu_custom_call.1
$region0: #{tpu_custom_call.1}
  #allocation0 [shape = 'u32[]', space=smem, size = 0x4, offset = 0x4, fixed_abs, tag = 'smem constant byte address 0x4 - core index']
  #allocation1 [shape = 'u32[144,128]{1,0:T(1,128)}', space=vmem, size = 0x12000, scoped, tag = 'internal scratch']
  %s0 = inlined_call_operand.hbm [shape: f32[8,16], index: 0, kind: input, shape index: {}]
  %s1 = inlined_call_operand.hbm [shape: f32[280,128], index: 1, kind: input, shape index: {}]
  %s2 = inlined_call_operand.hbm [shape: f32[8,128], index: 2, kind: output, shape index: {}]
  %s3 = sld [smem:[#allocation0]]
  $region26: #{tpu_custom_call.1} parent=0
    _
  %s5 = ssub.s32 1, %s3
  %s6 = scalar_select 0, %s5, %s3
  $region1: #{tpu_custom_call.1} parent=0
    #allocation2 [shape = 'u8[4096]{0}', space=vmem, size = 0x1000, scoped, tag = 'input window, operand 0, single buffered']
    #allocation3 [shape = 's32[1]{0}', space=sflag, size = 0x4, scoped, tag = 'scoped memory for tpu_custom_call.1']
    #allocation4 [shape = 's32[1]{0}', space=sflag, size = 0x4, scoped, tag = 'scoped memory for tpu_custom_call.1']
    #allocation5 [shape = 'u8[143360]{0}', space=vmem, size = 0x23000, scoped, tag = 'input window, operand 1, single buffered']
    #allocation6 [shape = 's32[1]{0}', space=sflag, size = 0x4, scoped, tag = 'scoped memory for tpu_custom_call.1']
    #allocation7 [shape = 'u8[4096]{0}', space=vmem, size = 0x1000, scoped, tag = 'output window, operand 0, single buffered']
    %7 = vsyncpa [#allocation3], 0
    %8 = vsyncpa [#allocation6], 0
    %9 = vsyncpa [#allocation4], 0
    // Predicated region
    $region2: #{tpu_custom_call.1} parent=1 // pred_check
      _
    $region3: #{tpu_custom_call.1} parent=1 // pred_check_branch
      %11 = sbr.rel (0) target = $region5
    $region4: #{tpu_custom_call.1} parent=1 // pred_region
      %s13 = ssub.s32 128, 128
      %14 = vsyncadd [#allocation3], %s13
      %s16 = sshll.u32 [#allocation2], 4
      %s17 = int_to_ptr.vmem [resolvable:$true] %s16
      %19 = dma.hbm_to_vmem [thread:$0]  %s0, 128, %s17, [#allocation3]
    $region5: #{tpu_custom_call.1} parent=1 // pred_fallthru
      _
    // Predicated region
    $region6: #{tpu_custom_call.1} parent=1 // pred_check
      _
    $region7: #{tpu_custom_call.1} parent=1 // pred_check_branch
      %21 = sbr.rel (0) target = $region9
    $region8: #{tpu_custom_call.1} parent=1 // pred_region
      %s23 = ssub.s32 4480, 4480
      %24 = vsyncadd [#allocation6], %s23
      %s25 = sshll.u32 [#allocation5], 4
      %s26 = int_to_ptr.vmem [resolvable:$true] %s25
      %31 = dma.hbm_to_vmem [thread:$0]  %s1, 4480, %s26, [#allocation6], 128, 128, 8
    $region9: #{tpu_custom_call.1} parent=1 // pred_fallthru
      _
    // Predicated region
    $region10: #{tpu_custom_call.1} parent=1 // pred_check
      _
    $region11: #{tpu_custom_call.1} parent=1 // pred_check_branch
      %33 = sbr.rel (0) target = $region13
    $region12: #{tpu_custom_call.1} parent=1 // pred_region
      %34 = dma.done [#allocation3], 128
    $region13: #{tpu_custom_call.1} parent=1 // pred_fallthru
      _
    // Predicated region
    $region14: #{tpu_custom_call.1} parent=1 // pred_check
      _
    $region15: #{tpu_custom_call.1} parent=1 // pred_check_branch
      %36 = sbr.rel (0) target = $region17
    $region16: #{tpu_custom_call.1} parent=1 // pred_region
      %37 = dma.done [#allocation6], 4480
    $region17: #{tpu_custom_call.1} parent=1 // pred_fallthru
      _
    %v38 = vld [vmem:[#allocation2] sm:$0xff]
    %v39 = vld [vmem:[#allocation5] sm:$0xff]
    %v40 = vld [vmem:[#allocation5 + $0x8] sm:$0xff]
    %v41 = vld [vmem:[#allocation5 + $0x10] sm:$0xff]
    %v42 = vld [vmem:[#allocation5 + $0x18] sm:$0xff]
    %v43 = vld [vmem:[#allocation5 + $0x20] sm:$0xff]
    %v44 = vld [vmem:[#allocation5 + $0x28] sm:$0xff]
    %v45 = vld [vmem:[#allocation5 + $0x30] sm:$0xff]
    %v46 = vld [vmem:[#allocation5 + $0x38] sm:$0xff]
    %v47 = vld [vmem:[#allocation5 + $0x40] sm:$0xff]
    %v48 = vld [vmem:[#allocation5 + $0x48] sm:$0xff]
    %v49 = vld [vmem:[#allocation5 + $0x50] sm:$0xff]
    %v50 = vld [vmem:[#allocation5 + $0x58] sm:$0xff]
    %v51 = vld [vmem:[#allocation5 + $0x60] sm:$0xff]
    %v52 = vld [vmem:[#allocation5 + $0x68] sm:$0xff]
    %v53 = vld [vmem:[#allocation5 + $0x70] sm:$0xff]
    %v54 = vld [vmem:[#allocation5 + $0x78] sm:$0xff]
    %v55 = vld [vmem:[#allocation5 + $0x80] sm:$0xff]
    %v56 = vld [vmem:[#allocation5 + $0x88] sm:$0xff]
    %v57 = vld [vmem:[#allocation5 + $0x90] sm:$0xff]
    %v58 = vld [vmem:[#allocation5 + $0x98] sm:$0xff]
    %v59 = vld [vmem:[#allocation5 + $0xa0] sm:$0xff]
    %v60 = vld [vmem:[#allocation5 + $0xa8] sm:$0xff]
    %v61 = vld [vmem:[#allocation5 + $0xb0] sm:$0xff]
    %v62 = vld [vmem:[#allocation5 + $0xb8] sm:$0xff]
    %v63 = vld [vmem:[#allocation5 + $0xc0] sm:$0xff]
    %v64 = vld [vmem:[#allocation5 + $0xc8] sm:$0xff]
    %v65 = vld [vmem:[#allocation5 + $0xd0] sm:$0xff]
    %v66 = vld [vmem:[#allocation5 + $0xd8] sm:$0xff]
    %v67 = vld [vmem:[#allocation5 + $0xe0] sm:$0xff]
    %v68 = vld [vmem:[#allocation5 + $0xe8] sm:$0xff]
    %v69 = vld [vmem:[#allocation5 + $0xf0] sm:$0xff]
    %v70 = vld [vmem:[#allocation5 + $0xf8] sm:$0xff]
    %v71 = vld [vmem:[#allocation5 + $0x100] sm:$0xff]
    %v72 = vld [vmem:[#allocation5 + $0x108] sm:$0xff]
    %v73 = vld [vmem:[#allocation5 + $0x110] sm:$0x1]
    %v74 = vld [vmem:[#allocation5 + $0x111] sm:$0x1]
    %v75 = vld [vmem:[#allocation5 + $0x112] sm:$0x1]
    %v76 = vlaneseq
    %v77 = vshrl.u32 %v76, 7
    %v78 = vsub.s32 0, %v77
    %v79 = vrot.slane %v73, %v78
    %vm80 = vcmask 130048
    %v82 = vsel %vm80, %v38, 0
    %84 = vmatprep.subr.mxu0 0.0
    %85 = vmatpush1.msra.mxu0 %v39
    %86 = vmatprep.subr.mxu0 0.0
    %87 = vmatpush1.msra.mxu0 %v40
    %88 = vmatprep.subr.mxu0 0.0
    %89 = vmatpush1.msra.mxu0 0.0
    %90 = vmatprep.subr.mxu0 0.0
    %91 = vmatpush1.msra.mxu0 0.0
    %92 = vmatprep.subr.mxu0 0.0
    %93 = vmatpush1.msra.mxu0 0.0
    %94 = vmatprep.subr.mxu0 0.0
    %95 = vmatpush1.msra.mxu0 0.0
    %96 = vmatprep.subr.mxu0 0.0
    %97 = vmatpush1.msra.mxu0 0.0
    %98 = vmatprep.subr.mxu0 0.0
    %99 = vmatpush1.msra.mxu0 0.0
    %100 = vmatprep.subr.mxu0 0.0
    %101 = vmatpush1.msra.mxu0 0.0
    %102 = vmatprep.subr.mxu0 0.0
    %103 = vmatpush1.msra.mxu0 0.0
    %104 = vmatprep.subr.mxu0 0.0
    %105 = vmatpush1.msra.mxu0 0.0
    %106 = vmatprep.subr.mxu0 0.0
    %107 = vmatpush1.msra.mxu0 0.0
    %108 = vmatprep.subr.mxu0 0.0
    %109 = vmatpush1.msra.mxu0 0.0
    %110 = vmatprep.subr.mxu0 0.0
    %111 = vmatpush1.msra.mxu0 0.0
    %112 = vmatprep.subr.mxu0 0.0
    %113 = vmatpush1.msra.mxu0 0.0
    %114 = vmatprep.subr.mxu0 0.0
    %115 = vmatpush1.msra.mxu0 0.0
    %116 = vmatprep.subr.mxu0 0.0
    %117 = vmatpush1.msra.mxu0 0.0
    %118 = vmatprep.subr.mxu0 0.0
    %119 = vmatpush1.msra.mxu0 0.0
    %120 = vmatprep.subr.mxu0 0.0
    %121 = vmatpush1.msra.mxu0 0.0
    %122 = vmatprep.subr.mxu0 0.0
    %123 = vmatpush1.msra.mxu0 0.0
    %124 = vmatprep.subr.mxu0 0.0
    %125 = vmatpush1.msra.mxu0 0.0
    %126 = vmatprep.subr.mxu0 0.0
    %127 = vmatpush1.msra.mxu0 0.0
    %128 = vmatprep.subr.mxu0 0.0
    %129 = vmatpush1.msra.mxu0 0.0
    %130 = vmatprep.subr.mxu0 0.0
    %131 = vmatpush1.msra.mxu0 0.0
    %132 = vmatprep.subr.mxu0 0.0
    %133 = vmatpush1.msra.mxu0 0.0
    %134 = vmatprep.subr.mxu0 0.0
    %135 = vmatpush1.msra.mxu0 0.0
    %136 = vmatprep.subr.mxu0 0.0
    %137 = vmatpush1.msra.mxu0 0.0
    %138 = vmatprep.subr.mxu0 0.0
    %139 = vmatpush1.msra.mxu0 0.0
    %140 = vmatprep.subr.mxu0 0.0
    %141 = vmatpush1.msra.mxu0 0.0
    %142 = vmatprep.subr.mxu0 0.0
    %143 = vmatpush1.msra.mxu0 0.0
    %144 = vmatprep.subr.mxu0 0.0
    %145 = vmatpush1.msra.mxu0 0.0
    %146 = vmatprep.subr.mxu0 0.0
    %147 = vmatpush1.msra.mxu0 0.0
    %148 = vmatprep.mubr.f32.mxu0 0.0
    %149 = vmatmul.mubr.f32.gmra.mrb[0].mxu0 %v82
    %v150 = vpop.f32.mrb[0].mxu0
    %v151 = vadd.f32 %v79, %v150
    %v152 = vpop.f32.mrb[0].mxu0
    %153 = vdwg.mxu0
    %v154 = vmax.f32 %v151, 0.0
    %v155 = vlaneseq
    %v156 = vshrl.u32 %v155, 7
    %v157 = vsub.s32 0, %v156
    %v158 = vrot.slane %v74, %v157
    %159 = vmatprep.subr.mxu0 0.0
    %160 = vmatpush1.msra.mxu0 %v41
    %161 = vmatprep.subr.mxu0 0.0
    %162 = vmatpush1.msra.mxu0 %v42
    %163 = vmatprep.subr.mxu0 0.0
    %164 = vmatpush1.msra.mxu0 %v43
    %165 = vmatprep.subr.mxu0 0.0
    %166 = vmatpush1.msra.mxu0 %v44
    %167 = vmatprep.subr.mxu0 0.0
    %168 = vmatpush1.msra.mxu0 %v45
    %169 = vmatprep.subr.mxu0 0.0
    %170 = vmatpush1.msra.mxu0 %v46
    %171 = vmatprep.subr.mxu0 0.0
    %172 = vmatpush1.msra.mxu0 %v47
    %173 = vmatprep.subr.mxu0 0.0
    %174 = vmatpush1.msra.mxu0 %v48
    %175 = vmatprep.subr.mxu0 0.0
    %176 = vmatpush1.msra.mxu0 %v49
    %177 = vmatprep.subr.mxu0 0.0
    %178 = vmatpush1.msra.mxu0 %v50
    %179 = vmatprep.subr.mxu0 0.0
    %180 = vmatpush1.msra.mxu0 %v51
    %181 = vmatprep.subr.mxu0 0.0
    %182 = vmatpush1.msra.mxu0 %v52
    %183 = vmatprep.subr.mxu0 0.0
    %184 = vmatpush1.msra.mxu0 %v53
    %185 = vmatprep.subr.mxu0 0.0
    %186 = vmatpush1.msra.mxu0 %v54
    %187 = vmatprep.subr.mxu0 0.0
    %188 = vmatpush1.msra.mxu0 %v55
    %189 = vmatprep.subr.mxu0 0.0
    %190 = vmatpush1.msra.mxu0 %v56
    %191 = vmatprep.subr.mxu0 0.0
    %192 = vmatpush1.msra.mxu0 0.0
    %193 = vmatprep.subr.mxu0 0.0
    %194 = vmatpush1.msra.mxu0 0.0
    %195 = vmatprep.subr.mxu0 0.0
    %196 = vmatpush1.msra.mxu0 0.0
    %197 = vmatprep.subr.mxu0 0.0
    %198 = vmatpush1.msra.mxu0 0.0
    %199 = vmatprep.subr.mxu0 0.0
    %200 = vmatpush1.msra.mxu0 0.0
    %201 = vmatprep.subr.mxu0 0.0
    %202 = vmatpush1.msra.mxu0 0.0
    %203 = vmatprep.subr.mxu0 0.0
    %204 = vmatpush1.msra.mxu0 0.0
    %205 = vmatprep.subr.mxu0 0.0
    %206 = vmatpush1.msra.mxu0 0.0
    %207 = vmatprep.subr.mxu0 0.0
    %208 = vmatpush1.msra.mxu0 0.0
    %209 = vmatprep.subr.mxu0 0.0
    %210 = vmatpush1.msra.mxu0 0.0
    %211 = vmatprep.subr.mxu0 0.0
    %212 = vmatpush1.msra.mxu0 0.0
    %213 = vmatprep.subr.mxu0 0.0
    %214 = vmatpush1.msra.mxu0 0.0
    %215 = vmatprep.subr.mxu0 0.0
    %216 = vmatpush1.msra.mxu0 0.0
    %217 = vmatprep.subr.mxu0 0.0
    %218 = vmatpush1.msra.mxu0 0.0
    %219 = vmatprep.subr.mxu0 0.0
    %220 = vmatpush1.msra.mxu0 0.0
    %221 = vmatprep.subr.mxu0 0.0
    %222 = vmatpush1.msra.mxu0 0.0
    %223 = vmatprep.mubr.f32.mxu0 0.0
    %224 = vmatmul.mubr.f32.gmra.mrb[0].mxu0 %v154
    %v225 = vpop.f32.mrb[0].mxu0
    %v226 = vadd.f32 %v158, %v225
    %v227 = vpop.f32.mrb[0].mxu0
    %228 = vdwg.mxu0
    %v229 = vmax.f32 %v226, 0.0
    %v230 = vlaneseq
    %v231 = vshrl.u32 %v230, 7
    %v232 = vsub.s32 0, %v231
    %v233 = vrot.slane %v75, %v232
    %234 = vmatprep.subr.mxu0 0.0
    %235 = vmatpush1.msra.mxu0 %v57
    %236 = vmatprep.subr.mxu0 0.0
    %237 = vmatpush1.msra.mxu0 %v58
    %238 = vmatprep.subr.mxu0 0.0
    %239 = vmatpush1.msra.mxu0 %v59
    %240 = vmatprep.subr.mxu0 0.0
    %241 = vmatpush1.msra.mxu0 %v60
    %242 = vmatprep.subr.mxu0 0.0
    %243 = vmatpush1.msra.mxu0 %v61
    %244 = vmatprep.subr.mxu0 0.0
    %245 = vmatpush1.msra.mxu0 %v62
    %246 = vmatprep.subr.mxu0 0.0
    %247 = vmatpush1.msra.mxu0 %v63
    %248 = vmatprep.subr.mxu0 0.0
    %249 = vmatpush1.msra.mxu0 %v64
    %250 = vmatprep.subr.mxu0 0.0
    %251 = vmatpush1.msra.mxu0 %v65
    %252 = vmatprep.subr.mxu0 0.0
    %253 = vmatpush1.msra.mxu0 %v66
    %254 = vmatprep.subr.mxu0 0.0
    %255 = vmatpush1.msra.mxu0 %v67
    %256 = vmatprep.subr.mxu0 0.0
    %257 = vmatpush1.msra.mxu0 %v68
    %258 = vmatprep.subr.mxu0 0.0
    %259 = vmatpush1.msra.mxu0 %v69
    %260 = vmatprep.subr.mxu0 0.0
    %261 = vmatpush1.msra.mxu0 %v70
    %262 = vmatprep.subr.mxu0 0.0
    %263 = vmatpush1.msra.mxu0 %v71
    %264 = vmatprep.subr.mxu0 0.0
    %265 = vmatpush1.msra.mxu0 %v72
    %266 = vmatprep.subr.mxu0 0.0
    %267 = vmatpush1.msra.mxu0 0.0
    %268 = vmatprep.subr.mxu0 0.0
    %269 = vmatpush1.msra.mxu0 0.0
    %270 = vmatprep.subr.mxu0 0.0
    %271 = vmatpush1.msra.mxu0 0.0
    %272 = vmatprep.subr.mxu0 0.0
    %273 = vmatpush1.msra.mxu0 0.0
    %274 = vmatprep.subr.mxu0 0.0
    %275 = vmatpush1.msra.mxu0 0.0
    %276 = vmatprep.subr.mxu0 0.0
    %277 = vmatpush1.msra.mxu0 0.0
    %278 = vmatprep.subr.mxu0 0.0
    %279 = vmatpush1.msra.mxu0 0.0
    %280 = vmatprep.subr.mxu0 0.0
    %281 = vmatpush1.msra.mxu0 0.0
    %282 = vmatprep.subr.mxu0 0.0
    %283 = vmatpush1.msra.mxu0 0.0
    %284 = vmatprep.subr.mxu0 0.0
    %285 = vmatpush1.msra.mxu0 0.0
    %286 = vmatprep.subr.mxu0 0.0
    %287 = vmatpush1.msra.mxu0 0.0
    %288 = vmatprep.subr.mxu0 0.0
    %289 = vmatpush1.msra.mxu0 0.0
    %290 = vmatprep.subr.mxu0 0.0
    %291 = vmatpush1.msra.mxu0 0.0
    %292 = vmatprep.subr.mxu0 0.0
    %293 = vmatpush1.msra.mxu0 0.0
    %294 = vmatprep.subr.mxu0 0.0
    %295 = vmatpush1.msra.mxu0 0.0
    %296 = vmatprep.subr.mxu0 0.0
    %297 = vmatpush1.msra.mxu0 0.0
    %298 = vmatprep.mubr.f32.mxu0 0.0
    %299 = vmatmul.mubr.f32.gmra.mrb[0].mxu0 %v229
    %v300 = vpop.f32.mrb[0].mxu0
    %v301 = vadd.f32 %v233, %v300
    %v302 = vpop.f32.mrb[0].mxu0
    %303 = vdwg.mxu0
    %v304 = vtanh.pop %v301
    %305 = vst [vmem:[#allocation7] sm:$0xff] %v304
    // Predicated region
    $region18: #{tpu_custom_call.1} parent=1 // pred_check
      _
    $region19: #{tpu_custom_call.1} parent=1 // pred_check_branch
      %307 = sbr.rel (0) target = $region21
    $region20: #{tpu_custom_call.1} parent=1 // pred_region
      %s309 = ssub.s32 128, 128
      %310 = vsyncadd [#allocation4], %s309
      %s312 = sshll.u32 [#allocation7], 4
      %s313 = int_to_ptr.vmem [resolvable:$true] %s312
      %315 = dma.vmem_to_hbm [thread:$0]  %s313, 128, %s2, [#allocation4]
    $region21: #{tpu_custom_call.1} parent=1 // pred_fallthru
      _
    // Predicated region
    $region22: #{tpu_custom_call.1} parent=1 // pred_check
      _
    $region23: #{tpu_custom_call.1} parent=1 // pred_check_branch
      %317 = sbr.rel (0) target = $region25
    $region24: #{tpu_custom_call.1} parent=1 // pred_region
      %318 = dma.done [#allocation4], 128
    $region25: #{tpu_custom_call.1} parent=1 // pred_fallthru
      _
    %319 = vsyncpa [#allocation3], 1
    %320 = vsyncpa [#allocation6], 1
    %321 = vsyncpa [#allocation4], 1

</llo_original>
